<compile_context>
chip_gen: v6e
topology: v6e:2x2x1
jax: 0.10.0
libtpu: 0.0.40
codegen_flags: <defaults>
</compile_context>

<pallas_src>
import functools

import jax
import jax.numpy as jnp
from jax.experimental import pallas as pl
from jax.experimental.pallas import tpu as pltpu

_VMEM_LIMIT = 48 * 1024 * 1024   # > v5e 16 MiB default, < v7x 64 MiB physical


def _round_up(x, m):
    return ((x + m - 1) // m) * m


def _pad2(x, rows, cols):
    r, c = x.shape
    return jnp.pad(x, ((0, rows - r), (0, cols - c)))


def _row_tile(dim, cap=512):
    """Sublane-dim tile: multiple of 8 dividing `dim`; prefer >=2 blocks
    along the (parallel) row axis so v7x's second TensorCore is not idle."""
    for t in (512, 256, 128, 64, 32, 16, 8):
        if t <= cap and dim % t == 0 and dim // t >= 2:
            return t
    return dim


def _lane_tile(dim, cap=512):
    """Lane / contraction tile: multiple of 128 dividing `dim` (dim % 128 == 0)."""
    for t in (512, 384, 256, 128):
        if t <= cap and dim % t == 0:
            return t
    return dim


# --------------------------------------------------------------------------
# Tiled MXU matmul (used for adj @ x).  Inputs are already padded; no
# pad / slice happens inside (keeps everything in the padded domain).
# --------------------------------------------------------------------------

def _matmul_kernel(a_ref, b_ref, o_ref, acc_ref):
    @pl.when(pl.program_id(2) == 0)
    def _():
        acc_ref[...] = jnp.zeros_like(acc_ref)

    acc_ref[...] += jnp.dot(a_ref[...], b_ref[...],
                            preferred_element_type=jnp.float32)

    @pl.when(pl.program_id(2) == pl.num_programs(2) - 1)
    def _():
        o_ref[...] = acc_ref[...].astype(o_ref.dtype)


def pallas_matmul_padded(a, b, *, out_dtype=jnp.float32):
    """a: (M, K), b: (K, N); M multiple of 8, K/N multiples of 128."""
    M, K = a.shape
    K2, N = b.shape
    assert K == K2
    tm = _row_tile(M)
    tk = _lane_tile(K)
    tn = _lane_tile(N)
    assert M % tm == 0 and K % tk == 0 and N % tn == 0
    return pl.pallas_call(
        _matmul_kernel,
        out_shape=jax.ShapeDtypeStruct((M, N), out_dtype),
        grid_spec=pltpu.PrefetchScalarGridSpec(
            num_scalar_prefetch=0,
            grid=(M // tm, N // tn, K // tk),
            in_specs=[
                pl.BlockSpec((tm, tk), lambda i, j, k: (i, k)),
                pl.BlockSpec((tk, tn), lambda i, j, k: (k, j)),
            ],
            out_specs=pl.BlockSpec((tm, tn), lambda i, j, k: (i, j)),
            scratch_shapes=[pltpu.VMEM((tm, tn), jnp.float32)],
        ),
        compiler_params=pltpu.CompilerParams(
            dimension_semantics=("parallel", "parallel", "arbitrary"),
            vmem_limit_bytes=_VMEM_LIMIT),
    )(a, b)


# --------------------------------------------------------------------------
# Fused ARMA branch layer (poly-order folded into output lanes):
#   acc = [AX | X0] @ W_stack          (one deep matmul per tile)
#   out = sum_k relu(acc[:, k*HP:(k+1)*HP] + b_stack[:, k*HP:(k+1)*HP])
# (W_stack / b_stack already carry the 2x deep factor and the 1/P mean.)
# --------------------------------------------------------------------------

def _arma_fused_kernel(axx_ref, w_ref, b_ref, o_ref, acc_ref, *, poly_order, hp):
    q = pl.program_id(1)

    @pl.when(q == 0)
    def _():
        acc_ref[...] = jnp.zeros_like(acc_ref)

    acc_ref[...] += jnp.dot(axx_ref[...], w_ref[...],
                            preferred_element_type=jnp.float32)

    @pl.when(q == pl.num_programs(1) - 1)
    def _():
        z = acc_ref[...] + b_ref[...]              # (tm, P*hp) + (1, P*hp)
        total = jnp.maximum(z[:, 0:hp], 0.0)       # static lane-aligned slices
        for k in range(1, poly_order):
            total = total + jnp.maximum(z[:, k * hp:(k + 1) * hp], 0.0)
        o_ref[...] = total.astype(o_ref.dtype)


def arma_layer_padded(x_p, adj_p_bf16, w_init, w_deep, bias):
    """One ARMA loop in the padded domain.
    x_p: (NP, FP) f32 zero-padded activations; adj_p_bf16: (NP, NP) bf16
    zero-padded adjacency; w_init / w_deep: (P, F, H) laid out (in, out);
    bias: (P, H).  Returns (NP, HP) f32, still padded.  Padded rows may be
    relu(bias) > 0 but never feed back into real rows (padded adj cols are 0).
    """
    NP, FP = x_p.shape
    P, F, H = w_init.shape
    assert w_deep.shape == (P, F, H) and bias.shape == (P, H)
    HP = _round_up(H, 128)
    inv_p = 1.0 / P

    # adj @ x on the MXU (bf16 in, f32 accumulate); k-independent, done once.
    ax_p = pallas_matmul_padded(adj_p_bf16, x_p.astype(jnp.bfloat16))

    # [AX | X0] along the contraction axis (small NP x 2FP copy).
    axx_p = jnp.concatenate([ax_p, x_p], axis=1)          # (NP, 2*FP) f32

    # Stack (init, 2*deep) along K and the P matrices along output lanes;
    # fold 1/P into weights and bias (valid since relu(c*x)=c*relu(x), c>0).
    w_stack = jnp.zeros((2 * FP, P * HP), jnp.float32)
    b_stack = jnp.zeros((1, P * HP), jnp.float32)
    for k in range(P):
        w_stack = w_stack.at[0:F, k * HP:k * HP + H].set(inv_p * w_init[k])
        w_stack = w_stack.at[FP:FP + F, k * HP:k * HP + H].set(
            2.0 * inv_p * w_deep[k])
        b_stack = b_stack.at[0, k * HP:k * HP + H].set(inv_p * bias[k])

    # Tiles: rows prefer >=2 blocks (megacore); keep the f32 acc <= ~4 MiB.
    acc_budget = 4 << 20
    row_cap = max(8, (acc_budget // (P * HP * 4)) // 8 * 8)
    tm = _row_tile(NP, cap=min(512, row_cap))
    tk = _lane_tile(2 * FP)

    kernel = functools.partial(_arma_fused_kernel, poly_order=P, hp=HP)
    return pl.pallas_call(
        kernel,
        out_shape=jax.ShapeDtypeStruct((NP, HP), jnp.float32),
        grid_spec=pltpu.PrefetchScalarGridSpec(
            num_scalar_prefetch=0,
            grid=(NP // tm, (2 * FP) // tk),
            in_specs=[
                pl.BlockSpec((tm, tk), lambda i, q: (i, q)),
                pl.BlockSpec((tk, P * HP), lambda i, q: (q, 0)),
                pl.BlockSpec((1, P * HP), lambda i, q: (0, 0)),
            ],
            out_specs=pl.BlockSpec((tm, HP), lambda i, q: (i, 0)),
            scratch_shapes=[pltpu.VMEM((tm, P * HP), jnp.float32)],
        ),
        compiler_params=pltpu.CompilerParams(
            dimension_semantics=("parallel", "arbitrary"),
            vmem_limit_bytes=_VMEM_LIMIT),
    )(axx_p, w_stack, b_stack)


def sim_2layer_arma_graphconv(feature, adj, params):
    """Full module forward (eval mode; query_edges=None as in __init__)."""
    # TODO(synk): stochastic training-mode nn.Dropout is not implemented;
    # this is the eval-mode (identity-dropout) forward.
    N, F = feature.shape
    out_dim = params["w2_init"].shape[2]
    NP = _round_up(N, 128)
    FP = _round_up(F, 128)

    # Pad the adjacency ONCE (shared by both layers) and cast to bf16 once.
    adj_p = _pad2(adj.astype(jnp.bfloat16), NP, NP)
    x_p = _pad2(feature, NP, FP)

    h_p = arma_layer_padded(x_p, adj_p,
                            params["w1_init"], params["w1_deep"], params["bias1"])
    o_p = arma_layer_padded(h_p, adj_p,
                            params["w2_init"], params["w2_deep"], params["bias2"])

    # TODO(synk): query_edges gather + nn.Linear(2*output_dim, output_dim)
    # path is skipped (module default query_edges=None returns `output`).
    return o_p[:N, :out_dim]


if __name__ == "__main__":
    poly_order = 2
    n_nodes = 30          # not a multiple of 8/128 -> exercises the padding path
    feat_dim = 16
    hidden_dim = 32
    output_dim = 8

    key = jax.random.PRNGKey(0)
    ks = jax.random.split(key, 8)

    feature = jax.random.normal(ks[0], (n_nodes, feat_dim), dtype=jnp.float32)
    adj = jax.random.normal(ks[1], (n_nodes, n_nodes), dtype=jnp.float32) / n_nodes

    def glorot(k, shape):
        fan_in, fan_out = shape[-2], shape[-1]
        lim = (6.0 / (fan_in + fan_out)) ** 0.5
        return jax.random.uniform(k, shape, jnp.float32, -lim, lim)

    # Biases are zero-initialized in the module; use small non-zero values
    # here to exercise the bias path of the kernel.
    params = {
        "w1_init": glorot(ks[2], (poly_order, feat_dim, hidden_dim)),
        "w1_deep": glorot(ks[3], (poly_order, feat_dim, hidden_dim)),
        "bias1": 0.1 * jax.random.normal(ks[6], (poly_order, hidden_dim), jnp.float32),
        "w2_init": glorot(ks[4], (poly_order, hidden_dim, output_dim)),
        "w2_deep": glorot(ks[5], (poly_order, hidden_dim, output_dim)),
        "bias2": 0.1 * jax.random.normal(ks[7], (poly_order, output_dim), jnp.float32),
    }

    fwd = jax.jit(sim_2layer_arma_graphconv)
    out = jax.block_until_ready(fwd(feature, adj, params))

    # Pure-JAX references with identical eval-mode math.
    def ref_layer(x, wi, wd, b, p_order, bf16_adj):
        if bf16_adj:   # mimic the kernel's precision policy for adj @ x
            ax = jnp.dot(adj.astype(jnp.bfloat16), x.astype(jnp.bfloat16),
                         preferred_element_type=jnp.float32)
        else:
            ax = adj @ x
        acc = None
        for k in range(p_order):
            z = jnp.maximum(ax @ wi[k] + 2.0 * (x @ wd[k]) + b[k], 0.0)
            acc = z if acc is None else acc + z
        return acc / p_order

    def ref_full(bf16_adj):
        h = ref_layer(feature, params["w1_init"], params["w1_deep"],
                      params["bias1"], poly_order, bf16_adj)
        return ref_layer(h, params["w2_init"], params["w2_deep"],
                         params["bias2"], poly_order, bf16_adj)

    ref_mimic = ref_full(True)    # same bf16 adj@x precision as the kernel
    ref_f32 = ref_full(False)     # full-f32 module semantics

    assert out.shape == (n_nodes, output_dim)
    err_mimic = float(jnp.max(jnp.abs(out - ref_mimic)))
    assert jnp.allclose(out, ref_mimic, atol=2e-3, rtol=2e-3), err_mimic
    err_full = float(jnp.max(jnp.abs(out - ref_f32)))
    assert jnp.allclose(out, ref_f32, atol=5e-2, rtol=5e-2), err_full

    print("KERNEL_OK")
</pallas_src>

<mosaic_0001>
module attributes {stable_mosaic.version = 11 : i64} {
  func.func @_matmul_kernel(%arg0: i32, %arg1: i32, %arg2: i32, %arg3: memref<64x128xbf16, #tpu.memory_space<vmem>>, %arg4: memref<128x128xbf16, #tpu.memory_space<vmem>>, %arg5: memref<64x128xf32, #tpu.memory_space<vmem>>, %arg6: memref<64x128xf32, #tpu.memory_space<vmem>>) attributes {dimension_semantics = [#tpu.dimension_semantics<parallel>, #tpu.dimension_semantics<parallel>, #tpu.dimension_semantics<arbitrary>], iteration_bounds = array<i64: 2, 1, 1>, scalar_prefetch = 0 : i64, scratch_operands = 1 : i64, tpu.core_type = #tpu.core_type<tc>, window_params = [{transform_indices = @transform_0, window_bounds = array<i64: 64, 128>}, {transform_indices = @transform_1, window_bounds = array<i64: 128, 128>}, {transform_indices = @transform_2, window_bounds = array<i64: 64, 128>}]} {
    %c0_i32 = arith.constant 0 : i32
    %0 = arith.cmpi eq, %arg2, %c0_i32 : i32
    %1 = arith.extui %0 : i1 to i32
    %c0_i32_0 = arith.constant 0 : i32
    %2 = arith.cmpi ne, %1, %c0_i32_0 : i32
    scf.if %2 {
      %cst_10 = arith.constant 0.000000e+00 : f32
      %12 = vector.broadcast %cst_10 : f32 to vector<64x128xf32>
      %c0_11 = arith.constant 0 : index
      %c0_12 = arith.constant 0 : index
      %13 = vector.load %arg6[%c0_11, %c0_12] : memref<64x128xf32, #tpu.memory_space<vmem>>, vector<64x128xf32>
      tpu.vector_store %arg6[%c0_11, %c0_12], %12 {strides = array<i32>} : memref<64x128xf32, #tpu.memory_space<vmem>>, vector<64x128xf32>,
    } else {
    }
    %c0 = arith.constant 0 : index
    %c0_1 = arith.constant 0 : index
    %3 = vector.load %arg6[%c0, %c0_1] : memref<64x128xf32, #tpu.memory_space<vmem>>, vector<64x128xf32>
    %c0_2 = arith.constant 0 : index
    %c0_3 = arith.constant 0 : index
    %4 = vector.load %arg3[%c0_2, %c0_3] : memref<64x128xbf16, #tpu.memory_space<vmem>>, vector<64x128xbf16>
    %c0_4 = arith.constant 0 : index
    %c0_5 = arith.constant 0 : index
    %5 = vector.load %arg4[%c0_4, %c0_5] : memref<128x128xbf16, #tpu.memory_space<vmem>>, vector<128x128xbf16>
    %cst = arith.constant dense<0.000000e+00> : vector<64x128xf32>
    %6 = tpu.matmul %4, %5, %cst {dimension_numbers = #tpu.dot_dimension_numbers<[1], [0], [0], [1], [0, 0, 1, 1], [], []>} : vector<64x128xbf16>, vector<128x128xbf16>, vector<64x128xf32> -> vector<64x128xf32>
    %7 = arith.addf %3, %6 : vector<64x128xf32>
    %c0_6 = arith.constant 0 : index
    %c0_7 = arith.constant 0 : index
    %8 = vector.load %arg6[%c0_6, %c0_7] : memref<64x128xf32, #tpu.memory_space<vmem>>, vector<64x128xf32>
    tpu.vector_store %arg6[%c0_6, %c0_7], %7 {strides = array<i32>} : memref<64x128xf32, #tpu.memory_space<vmem>>, vector<64x128xf32>,
    %c0_i32_8 = arith.constant 0 : i32
    %9 = arith.cmpi eq, %arg2, %c0_i32_8 : i32
    %10 = arith.extui %9 : i1 to i32
    %c0_i32_9 = arith.constant 0 : i32
    %11 = arith.cmpi ne, %10, %c0_i32_9 : i32
    scf.if %11 {
      %c0_10 = arith.constant 0 : index
      %c0_11 = arith.constant 0 : index
      %12 = vector.load %arg6[%c0_10, %c0_11] : memref<64x128xf32, #tpu.memory_space<vmem>>, vector<64x128xf32>
      %c0_12 = arith.constant 0 : index
      %c0_13 = arith.constant 0 : index
      %13 = vector.load %arg5[%c0_12, %c0_13] : memref<64x128xf32, #tpu.memory_space<vmem>>, vector<64x128xf32>
      tpu.vector_store %arg5[%c0_12, %c0_13], %12 {strides = array<i32>} : memref<64x128xf32, #tpu.memory_space<vmem>>, vector<64x128xf32>,
    } else {
    }
    return
  }
  func.func @transform_0(%arg0: i32, %arg1: i32, %arg2: i32) -> (i32, i32) {
    %c0_i32 = arith.constant 0 : i32
    return %arg0, %arg2 : i32, i32
  }
  func.func @transform_1(%arg0: i32, %arg1: i32, %arg2: i32) -> (i32, i32) {
    %c0_i32 = arith.constant 0 : i32
    return %arg2, %arg1 : i32, i32
  }
  func.func @transform_2(%arg0: i32, %arg1: i32, %arg2: i32) -> (i32, i32) {
    %c0_i32 = arith.constant 0 : i32
    return %arg0, %arg1 : i32, i32
  }
}

module attributes {stable_mosaic.version = 11 : i64} {
  func.func @_arma_fused_kernel(%arg0: i32, %arg1: i32, %arg2: memref<64x256xf32, #tpu.memory_space<vmem>>, %arg3: memref<256x256xf32, #tpu.memory_space<vmem>>, %arg4: memref<1x256xf32, #tpu.memory_space<vmem>>, %arg5: memref<64x128xf32, #tpu.memory_space<vmem>>, %arg6: memref<64x256xf32, #tpu.memory_space<vmem>>) attributes {dimension_semantics = [#tpu.dimension_semantics<parallel>, #tpu.dimension_semantics<arbitrary>], iteration_bounds = array<i64: 2, 1>, scalar_prefetch = 0 : i64, scratch_operands = 1 : i64, tpu.core_type = #tpu.core_type<tc>, window_params = [{transform_indices = @transform_0, window_bounds = array<i64: 64, 256>}, {transform_indices = @transform_1, window_bounds = array<i64: 256, 256>}, {pipeline_mode = #tpu.pipeline_mode<synchronous>, transform_indices = @transform_2, window_bounds = array<i64: 1, 256>}, {transform_indices = @transform_3, window_bounds = array<i64: 64, 128>}]} {
    %c0_i32 = arith.constant 0 : i32
    %0 = arith.cmpi eq, %arg1, %c0_i32 : i32
    %1 = arith.extui %0 : i1 to i32
    %c0_i32_0 = arith.constant 0 : i32
    %2 = arith.cmpi ne, %1, %c0_i32_0 : i32
    scf.if %2 {
      %cst_10 = arith.constant 0.000000e+00 : f32
      %12 = vector.broadcast %cst_10 : f32 to vector<64x256xf32>
      %c0_11 = arith.constant 0 : index
      %c0_12 = arith.constant 0 : index
      %13 = vector.load %arg6[%c0_11, %c0_12] : memref<64x256xf32, #tpu.memory_space<vmem>>, vector<64x256xf32>
      tpu.vector_store %arg6[%c0_11, %c0_12], %12 {strides = array<i32>} : memref<64x256xf32, #tpu.memory_space<vmem>>, vector<64x256xf32>,
    } else {
    }
    %c0 = arith.constant 0 : index
    %c0_1 = arith.constant 0 : index
    %3 = vector.load %arg6[%c0, %c0_1] : memref<64x256xf32, #tpu.memory_space<vmem>>, vector<64x256xf32>
    %c0_2 = arith.constant 0 : index
    %c0_3 = arith.constant 0 : index
    %4 = vector.load %arg2[%c0_2, %c0_3] : memref<64x256xf32, #tpu.memory_space<vmem>>, vector<64x256xf32>
    %c0_4 = arith.constant 0 : index
    %c0_5 = arith.constant 0 : index
    %5 = vector.load %arg3[%c0_4, %c0_5] : memref<256x256xf32, #tpu.memory_space<vmem>>, vector<256x256xf32>
    %cst = arith.constant dense<0.000000e+00> : vector<64x256xf32>
    %6 = tpu.matmul %4, %5, %cst {dimension_numbers = #tpu.dot_dimension_numbers<[1], [0], [0], [1], [0, 0, 1, 1], [], []>} : vector<64x256xf32>, vector<256x256xf32>, vector<64x256xf32> -> vector<64x256xf32>
    %7 = arith.addf %3, %6 : vector<64x256xf32>
    %c0_6 = arith.constant 0 : index
    %c0_7 = arith.constant 0 : index
    %8 = vector.load %arg6[%c0_6, %c0_7] : memref<64x256xf32, #tpu.memory_space<vmem>>, vector<64x256xf32>
    tpu.vector_store %arg6[%c0_6, %c0_7], %7 {strides = array<i32>} : memref<64x256xf32, #tpu.memory_space<vmem>>, vector<64x256xf32>,
    %c0_i32_8 = arith.constant 0 : i32
    %9 = arith.cmpi eq, %arg1, %c0_i32_8 : i32
    %10 = arith.extui %9 : i1 to i32
    %c0_i32_9 = arith.constant 0 : i32
    %11 = arith.cmpi ne, %10, %c0_i32_9 : i32
    scf.if %11 {
      %c0_10 = arith.constant 0 : index
      %c0_11 = arith.constant 0 : index
      %12 = vector.load %arg6[%c0_10, %c0_11] : memref<64x256xf32, #tpu.memory_space<vmem>>, vector<64x256xf32>
      %c0_12 = arith.constant 0 : index
      %c0_13 = arith.constant 0 : index
      %13 = vector.load %arg4[%c0_12, %c0_13] : memref<1x256xf32, #tpu.memory_space<vmem>>, vector<1x256xf32>
      %14 = vector.broadcast %13 : vector<1x256xf32> to vector<64x256xf32>
      %15 = arith.addf %12, %14 : vector<64x256xf32>
      %16 = vector.extract_strided_slice %15 {offsets = [0, 0], sizes = [64, 128], strides = [1, 1]} : vector<64x256xf32> to vector<64x128xf32>
      %cst_14 = arith.constant 0.000000e+00 : f32
      %17 = vector.broadcast %cst_14 : f32 to vector<64x128xf32>
      %18 = arith.maximumf %16, %17 : vector<64x128xf32>
      %19 = vector.extract_strided_slice %15 {offsets = [0, 128], sizes = [64, 128], strides = [1, 1]} : vector<64x256xf32> to vector<64x128xf32>
      %cst_15 = arith.constant 0.000000e+00 : f32
      %20 = vector.broadcast %cst_15 : f32 to vector<64x128xf32>
      %21 = arith.maximumf %19, %20 : vector<64x128xf32>
      %22 = arith.addf %18, %21 : vector<64x128xf32>
      %c0_16 = arith.constant 0 : index
      %c0_17 = arith.constant 0 : index
      %23 = vector.load %arg5[%c0_16, %c0_17] : memref<64x128xf32, #tpu.memory_space<vmem>>, vector<64x128xf32>
      tpu.vector_store %arg5[%c0_16, %c0_17], %22 {strides = array<i32>} : memref<64x128xf32, #tpu.memory_space<vmem>>, vector<64x128xf32>,
    } else {
    }
    return
  }
  func.func @transform_0(%arg0: i32, %arg1: i32) -> (i32, i32) {
    %c0_i32 = arith.constant 0 : i32
    return %arg0, %arg1 : i32, i32
  }
  func.func @transform_1(%arg0: i32, %arg1: i32) -> (i32, i32) {
    %c0_i32 = arith.constant 0 : i32
    %c0_i32_0 = arith.constant 0 : i32
    return %arg1, %c0_i32 : i32, i32
  }
  func.func @transform_2(%arg0: i32, %arg1: i32) -> (i32, i32) {
    %c0_i32 = arith.constant 0 : i32
    %c0_i32_0 = arith.constant 0 : i32
    %c0_i32_1 = arith.constant 0 : i32
    return %c0_i32, %c0_i32_0 : i32, i32
  }
  func.func @transform_3(%arg0: i32, %arg1: i32) -> (i32, i32) {
    %c0_i32 = arith.constant 0 : i32
    %c0_i32_0 = arith.constant 0 : i32
    return %arg0, %c0_i32 : i32, i32
  }
}

</mosaic_0001>

<llo_original>
// kernel: sim_2layer_arma_graphconv.4
$region0: #{sim_2layer_arma_graphconv.4}
  #allocation0 [shape = 'u32[]', space=smem, size = 0x4, offset = 0x4, fixed_abs, tag = 'smem constant byte address 0x4 - core index']
  #allocation1 [shape = 'u32[144,128]{1,0:T(1,128)}', space=vmem, size = 0x12000, scoped, tag = 'internal scratch']
  #allocation2 [shape = 'f32[64,128]{1,0:T(8,128)}', space=vmem, size = 0x8000, scoped, tag = 'scratch operand']
  %s0 = inlined_call_operand.vmem [shape: bf16[128,128], index: 0, kind: input, shape index: {}]
  %s1 = inlined_call_operand.vmem [shape: bf16[128,128], index: 1, kind: input, shape index: {}]
  %s2 = inlined_call_operand.vmem [shape: f32[128,128], index: 2, kind: output, shape index: {}]
  %s3 = sld [smem:[#allocation0]]
  $region49: #{sim_2layer_arma_graphconv.4} parent=0
    _
  %s5 = ssub.s32 1, %s3
  %s6 = scalar_select 0, %s5, %s3
  loop: start=0, step=1, limit=4
  $region2: #{sim_2layer_arma_graphconv.4} parent=0 // loop_pre_header
    _
  $region3: #{sim_2layer_arma_graphconv.4} parent=0 // loop_header
    %s8 = sphi 0, %s12
    %p9 = scmp.ge.s32.totalorder %s8, 4
    %s15 = sphi 0, %s34
    %s16 = sphi 0, %s30
    %s17 = sphi 0, %s26
    %s18 = sphi 0, %s15
    %s19 = sphi 0, %s16
    %s20 = sphi 0, %s17
    %s21 = sphi 0, %s18
    %s22 = sphi 0, %s19
    %s23 = sphi 0, %s20
    %s39 = sphi 0, %s41
    %s42 = sphi 0, %s39
    %s43 = sphi 0, %s42
    %s59 = sphi 0, %s43
    %s67 = sphi 0, %s69
    %s70 = sphi 0, %s67
    %s71 = sphi 0, %s70
    %s87 = sphi 0, %s71
    %s95 = sphi 0, %s97
    %s98 = sphi 0, %s95
    %s99 = sphi 0, %s98
    %s115 = sphi 0, %s99
  $region4: #{sim_2layer_arma_graphconv.4} parent=0 // loop_header_branch
    %11 = sbr.rel (%p9) target = $region8
  $region5: #{sim_2layer_arma_graphconv.4} parent=0 // loop_body
    %s13 = ssub.s32 %s8, 1
    %s14 = ssub.s32 %s8, 2
    %s24 = sadd.s32 1, %s17
    %p25 = scmp.ge.s32.totalorder %s24, 1
    %s26 = scalar_select %p25, 0, %s24
    %s27 = sadd.s32 1, %s16
    %s28 = scalar_select %p25, %s27, %s16
    %p29 = scmp.ge.s32.totalorder %s28, 1
    %s30 = scalar_select %p29, 0, %s28
    %s31 = sadd.s32 1, %s15
    %s32 = scalar_select %p29, %s31, %s15
    %p33 = scmp.ge.s32.totalorder %s32, 2
    %s34 = scalar_select %p33, 0, %s32
    %s35 = ssub.s32 %s15, %s34
    %s36 = ssub.s32 %s17, %s26
    %s37 = sor.u32 %s35, %s36
    %p38 = scmp.eq.s32.totalorder %s37, 0
    %s40 = sadd.s32 %s39, 1
    %s41 = scalar_select %p38, %s39, %s40
    %p44 = pneg %p38
    %p45 = scmp.eq.s32.totalorder %s8, 1
    %p46 = por %p44, %p45
    %p47 = scmp.ne.s32.totalorder %s39, %s42
    %p48 = scmp.eq.s32.totalorder %s8, 0
    %p49 = por %p47, %p48
    %p50 = scmp.ne.s32.totalorder %s39, %s42
    %p51 = scmp.eq.s32.totalorder %s13, 1
    %p52 = por %p50, %p51
    %p53 = scmp.ne.s32.totalorder %s42, %s43
    %p54 = scmp.eq.s32.totalorder %s13, 0
    %p55 = por %p53, %p54
    %p56 = scmp.ne.s32.totalorder %s42, %s43
    %p57 = scmp.eq.s32.totalorder %s14, 1
    %p58 = por %p56, %p57
    %p60 = scmp.ne.s32.totalorder %s43, %s59
    %p61 = scmp.eq.s32.totalorder %s14, 0
    %p62 = por %p60, %p61
    %s63 = ssub.s32 %s17, %s26
    %s64 = ssub.s32 %s16, %s30
    %s65 = sor.u32 %s63, %s64
    %p66 = scmp.eq.s32.totalorder %s65, 0
    %s68 = sadd.s32 %s67, 1
    %s69 = scalar_select %p66, %s67, %s68
    %p72 = pneg %p66
    %p73 = scmp.eq.s32.totalorder %s8, 1
    %p74 = por %p72, %p73
    %p75 = scmp.ne.s32.totalorder %s67, %s70
    %p76 = scmp.eq.s32.totalorder %s8, 0
    %p77 = por %p75, %p76
    %p78 = scmp.ne.s32.totalorder %s67, %s70
    %p79 = scmp.eq.s32.totalorder %s13, 1
    %p80 = por %p78, %p79
    %p81 = scmp.ne.s32.totalorder %s70, %s71
    %p82 = scmp.eq.s32.totalorder %s13, 0
    %p83 = por %p81, %p82
    %p84 = scmp.ne.s32.totalorder %s70, %s71
    %p85 = scmp.eq.s32.totalorder %s14, 1
    %p86 = por %p84, %p85
    %p88 = scmp.ne.s32.totalorder %s71, %s87
    %p89 = scmp.eq.s32.totalorder %s14, 0
    %p90 = por %p88, %p89
    %s91 = ssub.s32 %s15, %s34
    %s92 = ssub.s32 %s16, %s30
    %s93 = sor.u32 %s91, %s92
    %p94 = scmp.eq.s32.totalorder %s93, 0
    %s96 = sadd.s32 %s95, 1
    %s97 = scalar_select %p94, %s95, %s96
    %p100 = pneg %p94
    %p101 = scmp.eq.s32.totalorder %s8, 1
    %p102 = por %p100, %p101
    %p103 = scmp.ne.s32.totalorder %s95, %s98
    %p104 = scmp.eq.s32.totalorder %s8, 0
    %p105 = por %p103, %p104
    %p106 = scmp.ne.s32.totalorder %s95, %s98
    %p107 = scmp.eq.s32.totalorder %s13, 1
    %p108 = por %p106, %p107
    %p109 = scmp.ne.s32.totalorder %s98, %s99
    %p110 = scmp.eq.s32.totalorder %s13, 0
    %p111 = por %p109, %p110
    %p112 = scmp.ne.s32.totalorder %s98, %s99
    %p113 = scmp.eq.s32.totalorder %s14, 1
    %p114 = por %p112, %p113
    %p116 = scmp.ne.s32.totalorder %s99, %s115
    %p117 = scmp.eq.s32.totalorder %s14, 0
    %p118 = por %p116, %p117
    %p119 = scmp.le.s32.totalorder 1, %s8
    %p120 = scmp.lt.s32.totalorder %s8, 3
    %p121 = pnand %p119, %p120
    %p122 = pneg %p121
    // Predicated region
    $region9: #{sim_2layer_arma_graphconv.4} parent=5 // pred_check
      _
    $region10: #{sim_2layer_arma_graphconv.4} parent=5 // pred_check_branch
      %124 = sbr.rel (%p121) target = $region12
    $region11: #{sim_2layer_arma_graphconv.4} parent=5 // pred_region
      %s125 = ssub.s32 %s8, 1
      // Predicated region
      $region13: #{sim_2layer_arma_graphconv.4} parent=11 // pred_check
        %p126 = pneg %p83
      $region14: #{sim_2layer_arma_graphconv.4} parent=11 // pred_check_branch
        %128 = sbr.rel (%p126) target = $region16
      $region15: #{sim_2layer_arma_graphconv.4} parent=11 // pred_region
        %s129 = smul.u32 16, %s20
        %p130 = scmp.lt.s32.totalorder %s129, 15
        %s131 = scalar_select %p130, %s129, 15
        %p132 = scmp.lt.s32.totalorder %s19, 0
        %s133 = scalar_select %p132, %s19, 0
        %s134 = sadd.s32 %s133, %s131
        %s135 = smul.addr %s134, 4
        %s136 = scalar_lea.vmem %s1, %s135
        %s137 = smul.u32 16, %s20
      $region16: #{sim_2layer_arma_graphconv.4} parent=11 // pred_fallthru
        _
    $region12: #{sim_2layer_arma_graphconv.4} parent=5 // pred_fallthru
      _
    %p138 = scmp.lt.s32.totalorder %s8, 2
    // Predicated region
    $region17: #{sim_2layer_arma_graphconv.4} parent=5 // pred_check
      %p139 = pneg %p138
    $region18: #{sim_2layer_arma_graphconv.4} parent=5 // pred_check_branch
      %141 = sbr.rel (%p139) target = $region20
    $region19: #{sim_2layer_arma_graphconv.4} parent=5 // pred_region
      // Predicated region
      $region21: #{sim_2layer_arma_graphconv.4} parent=19 // pred_check
        %p142 = pneg %p49
      $region22: #{sim_2layer_arma_graphconv.4} parent=19 // pred_check_branch
        %144 = sbr.rel (%p142) target = $region24
      $region23: #{sim_2layer_arma_graphconv.4} parent=19 // pred_region
        %s145 = smul.u32 8, %s15
        %p146 = scmp.lt.s32.totalorder %s145, 15
        %s147 = scalar_select %p146, %s145, 15
        %p148 = scmp.lt.s32.totalorder %s17, 0
        %s149 = scalar_select %p148, %s17, 0
        %s150 = sadd.s32 %s149, %s147
        %s151 = smul.addr %s150, 4
        %s152 = scalar_lea.vmem %s0, %s151
        %s153 = smul.u32 8, %s15
      $region24: #{sim_2layer_arma_graphconv.4} parent=19 // pred_fallthru
        _
    $region20: #{sim_2layer_arma_graphconv.4} parent=5 // pred_fallthru
      _
    %p154 = scmp.le.s32.totalorder 1, %s8
    %p155 = scmp.lt.s32.totalorder %s8, 3
    %p156 = pnand %p154, %p155
    %p157 = pneg %p156
    // Predicated region
    $region25: #{sim_2layer_arma_graphconv.4} parent=5 // pred_check
      _
    $region26: #{sim_2layer_arma_graphconv.4} parent=5 // pred_check_branch
      %159 = sbr.rel (%p156) target = $region28
    $region27: #{sim_2layer_arma_graphconv.4} parent=5 // pred_region
      %s160 = ssub.s32 %s8, 1
      %s161 = smul.u32 8, %s18
      %p162 = scmp.lt.s32.totalorder %s161, 15
      %s163 = scalar_select %p162, %s161, 15
      %p164 = scmp.lt.s32.totalorder %s20, 0
      %s165 = scalar_select %p164, %s20, 0
      %s166 = sadd.s32 %s165, %s163
      %s167 = smul.addr %s166, 4
      %s168 = scalar_lea.vmem %s0, %s167
      %p169 = pneg %p55
      %p170 = pneg %p52
      %s171 = smul.u32 16, %s20
      %p172 = scmp.lt.s32.totalorder %s171, 15
      %s173 = scalar_select %p172, %s171, 15
      %p174 = scmp.lt.s32.totalorder %s19, 0
      %s175 = scalar_select %p174, %s19, 0
      %s176 = sadd.s32 %s175, %s173
      %s177 = smul.addr %s176, 4
      %s178 = scalar_lea.vmem %s1, %s177
      %p179 = pneg %p83
      %p180 = pneg %p80
      %p181 = pneg %p111
      %p182 = pneg %p108
      %s183 = smul.u32 8, %s18
      %p184 = scmp.lt.s32.totalorder %s183, 15
      %s185 = scalar_select %p184, %s183, 15
      %p186 = scmp.lt.s32.totalorder %s19, 0
      %s187 = scalar_select %p186, %s19, 0
      %s188 = sadd.s32 %s187, %s185
      %s189 = smul.addr %s188, 8
      %s190 = scalar_lea.vmem %s2, %s189
      %s191 = smul.u32 8, %s18
      %p192 = scmp.lt.s32.totalorder %s191, 15
      %s193 = scalar_select %p192, %s191, 15
      %p194 = scmp.lt.s32.totalorder %s20, 0
      %s195 = scalar_select %p194, %s20, 0
      %s196 = sadd.s32 %s195, %s193
      %s197 = smul.addr %s196, 4
      %s198 = scalar_lea.vmem %s0, %s197
      %s199 = smul.u32 8, %s18
      %s200 = smul.u32 16, %s20
      %p201 = scmp.lt.s32.totalorder %s200, 15
      %s202 = scalar_select %p201, %s200, 15
      %p203 = scmp.lt.s32.totalorder %s19, 0
      %s204 = scalar_select %p203, %s19, 0
      %s205 = sadd.s32 %s204, %s202
      %s206 = smul.addr %s205, 4
      %s207 = scalar_lea.vmem %s1, %s206
      %s208 = smul.u32 16, %s20
      %s209 = smul.u32 8, %s18
      %p210 = scmp.lt.s32.totalorder %s209, 15
      %s211 = scalar_select %p210, %s209, 15
      %p212 = scmp.lt.s32.totalorder %s19, 0
      %s213 = scalar_select %p212, %s19, 0
      %s214 = sadd.s32 %s213, %s211
      %s215 = smul.addr %s214, 8
      %s216 = scalar_lea.vmem %s2, %s215
      %s217 = smul.u32 8, %s18
      %p219 = scmp.eq.s32.totalorder %s20, 0
      // Predicated region
      $region29: #{sim_2layer_arma_graphconv.4} parent=27 // pred_check
        %p220 = pneg %p219
      $region30: #{sim_2layer_arma_graphconv.4} parent=27 // pred_check_branch
        %222 = sbr.rel (%p220) target = $region32
      $region31: #{sim_2layer_arma_graphconv.4} parent=27 // pred_region
        %223 = vst [vmem:[#allocation2] sm:$0xff] 0.0
        %224 = vst [vmem:[#allocation2 + $0x8] sm:$0xff] 0.0
        %225 = vst [vmem:[#allocation2 + $0x10] sm:$0xff] 0.0
        %226 = vst [vmem:[#allocation2 + $0x18] sm:$0xff] 0.0
        %227 = vst [vmem:[#allocation2 + $0x20] sm:$0xff] 0.0
        %228 = vst [vmem:[#allocation2 + $0x28] sm:$0xff] 0.0
        %229 = vst [vmem:[#allocation2 + $0x30] sm:$0xff] 0.0
        %230 = vst [vmem:[#allocation2 + $0x38] sm:$0xff] 0.0
      $region32: #{sim_2layer_arma_graphconv.4} parent=27 // pred_fallthru
        _
      %v231 = vld [vmem:[#allocation2] sm:$0xff]
      %v232 = vld [vmem:[#allocation2 + $0x8] sm:$0xff]
      %v233 = vld [vmem:[#allocation2 + $0x10] sm:$0xff]
      %v234 = vld [vmem:[#allocation2 + $0x18] sm:$0xff]
      %v235 = vld [vmem:[#allocation2 + $0x20] sm:$0xff]
      %v236 = vld [vmem:[#allocation2 + $0x28] sm:$0xff]
      %v237 = vld [vmem:[#allocation2 + $0x30] sm:$0xff]
      %v238 = vld [vmem:[#allocation2 + $0x38] sm:$0xff]
      %v239 = vld [vmem:[%s198] sm:$0xf]
      %v240 = vld [vmem:[%s198 + $0x4] sm:$0xf]
      %v241 = vld [vmem:[%s198 + $0x8] sm:$0xf]
      %v242 = vld [vmem:[%s198 + $0xc] sm:$0xf]
      %v243 = vld [vmem:[%s198 + $0x10] sm:$0xf]
      %v244 = vld [vmem:[%s198 + $0x14] sm:$0xf]
      %v245 = vld [vmem:[%s198 + $0x18] sm:$0xf]
      %v246 = vld [vmem:[%s198 + $0x1c] sm:$0xf]
      %v247 = vld [vmem:[%s207] sm:$0xf]
      %v248 = vld [vmem:[%s207 + $0x4] sm:$0xf]
      %v249 = vld [vmem:[%s207 + $0x8] sm:$0xf]
      %v250 = vld [vmem:[%s207 + $0xc] sm:$0xf]
      %v251 = vld [vmem:[%s207 + $0x10] sm:$0xf]
      %v252 = vld [vmem:[%s207 + $0x14] sm:$0xf]
      %v253 = vld [vmem:[%s207 + $0x18] sm:$0xf]
      %v254 = vld [vmem:[%s207 + $0x1c] sm:$0xf]
      %v255 = vld [vmem:[%s207 + $0x20] sm:$0xf]
      %v256 = vld [vmem:[%s207 + $0x24] sm:$0xf]
      %v257 = vld [vmem:[%s207 + $0x28] sm:$0xf]
      %v258 = vld [vmem:[%s207 + $0x2c] sm:$0xf]
      %v259 = vld [vmem:[%s207 + $0x30] sm:$0xf]
      %v260 = vld [vmem:[%s207 + $0x34] sm:$0xf]
      %v261 = vld [vmem:[%s207 + $0x38] sm:$0xf]
      %v262 = vld [vmem:[%s207 + $0x3c] sm:$0xf]
      %v271 = vunpack.c.l.b16 %v239
      %v272 = vunpack.c.l.b16 %v240
      %v273 = vunpack.c.l.b16 %v241
      %v274 = vunpack.c.l.b16 %v242
      %v275 = vunpack.c.l.b16 %v243
      %v276 = vunpack.c.l.b16 %v244
      %v277 = vunpack.c.l.b16 %v245
      %v278 = vunpack.c.l.b16 %v246
      %v279 = vpack.c.b16 %v272, %v271
      %v280 = vpack.c.b16 %v274, %v273
      %v281 = vpack.c.b16 %v276, %v275
      %v282 = vpack.c.b16 %v278, %v277
      %v303 = vunpack.c.l.b16 %v247
      %v304 = vunpack.c.l.b16 %v248
      %v305 = vunpack.c.l.b16 %v249
      %v306 = vunpack.c.l.b16 %v250
      %v307 = vunpack.c.l.b16 %v251
      %v308 = vunpack.c.l.b16 %v252
      %v309 = vunpack.c.l.b16 %v253
      %v310 = vunpack.c.l.b16 %v254
      %v311 = vunpack.c.l.b16 %v255
      %v312 = vunpack.c.l.b16 %v256
      %v313 = vunpack.c.l.b16 %v257
      %v314 = vunpack.c.l.b16 %v258
      %v315 = vunpack.c.l.b16 %v259
      %v316 = vunpack.c.l.b16 %v260
      %v317 = vunpack.c.l.b16 %v261
      %v318 = vunpack.c.l.b16 %v262
      %v319 = vpack.c.b16 %v304, %v303
      %v320 = vpack.c.b16 %v306, %v305
      %v321 = vpack.c.b16 %v308, %v307
      %v322 = vpack.c.b16 %v310, %v309
      %v323 = vpack.c.b16 %v312, %v311
      %v324 = vpack.c.b16 %v314, %v313
      %v325 = vpack.c.b16 %v316, %v315
      %v326 = vpack.c.b16 %v318, %v317
      %335 = vmatprep.subr.bf16.mxu0 0
      %336 = vmatpush1.bf16.msra.mxu0 %v326
      %337 = vmatprep.subr.bf16.mxu0 0
      %338 = vmatpush1.bf16.msra.mxu0 %v325
      %339 = vmatprep.subr.bf16.mxu0 0
      %340 = vmatpush1.bf16.msra.mxu0 %v324
      %341 = vmatprep.subr.bf16.mxu0 0
      %342 = vmatpush1.bf16.msra.mxu0 %v323
      %343 = vmatprep.subr.bf16.mxu0 0
      %344 = vmatpush1.bf16.msra.mxu0 %v322
      %345 = vmatprep.subr.bf16.mxu0 0
      %346 = vmatpush1.bf16.msra.mxu0 %v321
      %347 = vmatprep.subr.bf16.mxu0 0
      %348 = vmatpush1.bf16.msra.mxu0 %v320
      %349 = vmatprep.subr.bf16.mxu0 0
      %350 = vmatpush1.bf16.msra.mxu0 %v319
      %351 = vmatprep.subr.bf16.mxu0 0
      %352 = vmatpush2.bf16.msra.mxu0 0
      %353 = vmatprep.subr.bf16.mxu0 0
      %354 = vmatpush2.bf16.msra.mxu0 0
      %355 = vmatprep.subr.bf16.mxu0 0
      %356 = vmatpush2.bf16.msra.mxu0 0
      %357 = vmatprep.subr.bf16.mxu0 0
      %358 = vmatpush2.bf16.msra.mxu0 0
      %359 = vmatprep.subr.bf16.mxu0 0
      %360 = vmatpush2.bf16.msra.mxu0 0
      %361 = vmatprep.subr.bf16.mxu0 0
      %362 = vmatpush2.bf16.msra.mxu0 0
      %363 = vmatprep.subr.bf16.mxu0 0
      %364 = vmatpush2.bf16.msra.mxu0 0
      %365 = vmatprep.subr.bf16.mxu0 0
      %366 = vmatpush2.bf16.msra.mxu0 0
      %367 = vmatprep.mubr.bf16.mxu0 0
      %368 = vmatmul.mubr.bf16.gmra.mxu0 %v279
      %v369 = vpop.f32.mrf.mxu0
      %v370 = vadd.f32 0.0, %v369
      %v371 = vpop.f32.mrf.mxu0
      %v372 = vpop.f32.mrf.mxu0
      %v373 = vadd.f32 0.0, %v372
      %v374 = vpop.f32.mrf.mxu0
      %375 = vmatprep.mubr.bf16.mxu0 0
      %376 = vmatmul.mubr.bf16.gmra.mxu0 %v280
      %v377 = vpop.f32.mrf.mxu0
      %v378 = vadd.f32 0.0, %v377
      %v379 = vpop.f32.mrf.mxu0
      %v380 = vpop.f32.mrf.mxu0
      %v381 = vadd.f32 0.0, %v380
      %v382 = vpop.f32.mrf.mxu0
      %383 = vmatprep.mubr.bf16.mxu0 0
      %384 = vmatmul.mubr.bf16.gmra.mxu0 %v281
      %v385 = vpop.f32.mrf.mxu0
      %v386 = vadd.f32 0.0, %v385
      %v387 = vpop.f32.mrf.mxu0
      %v388 = vpop.f32.mrf.mxu0
      %v389 = vadd.f32 0.0, %v388
      %v390 = vpop.f32.mrf.mxu0
      %391 = vmatprep.mubr.bf16.mxu0 0
      %392 = vmatmul.mubr.bf16.gmra.mxu0 %v282
      %v393 = vpop.f32.mrf.mxu0
      %v394 = vadd.f32 0.0, %v393
      %v395 = vpop.f32.mrf.mxu0
      %v396 = vpop.f32.mrf.mxu0
      %v397 = vadd.f32 0.0, %v396
      %v398 = vpop.f32.mrf.mxu0
      %399 = vdwg.mxu0
      %v400 = vadd.f32 %v231, %v370
      %v401 = vadd.f32 %v232, %v373
      %v402 = vadd.f32 %v233, %v378
      %v403 = vadd.f32 %v234, %v381
      %v404 = vadd.f32 %v235, %v386
      %v405 = vadd.f32 %v236, %v389
      %v406 = vadd.f32 %v237, %v394
      %v407 = vadd.f32 %v238, %v397
      %408 = vst [vmem:[#allocation2] sm:$0xff] %v400
      %409 = vst [vmem:[#allocation2 + $0x8] sm:$0xff] %v401
      %410 = vst [vmem:[#allocation2 + $0x10] sm:$0xff] %v402
      %411 = vst [vmem:[#allocation2 + $0x18] sm:$0xff] %v403
      %412 = vst [vmem:[#allocation2 + $0x20] sm:$0xff] %v404
      %413 = vst [vmem:[#allocation2 + $0x28] sm:$0xff] %v405
      %414 = vst [vmem:[#allocation2 + $0x30] sm:$0xff] %v406
      %415 = vst [vmem:[#allocation2 + $0x38] sm:$0xff] %v407
      // Predicated region
      $region33: #{sim_2layer_arma_graphconv.4} parent=27 // pred_check
        %p416 = pneg %p219
      $region34: #{sim_2layer_arma_graphconv.4} parent=27 // pred_check_branch
        %418 = sbr.rel (%p416) target = $region36
      $region35: #{sim_2layer_arma_graphconv.4} parent=27 // pred_region
        %v419 = vld [vmem:[#allocation2] sm:$0xff]
        %v420 = vld [vmem:[#allocation2 + $0x8] sm:$0xff]
        %v421 = vld [vmem:[#allocation2 + $0x10] sm:$0xff]
        %v422 = vld [vmem:[#allocation2 + $0x18] sm:$0xff]
        %v423 = vld [vmem:[#allocation2 + $0x20] sm:$0xff]
        %v424 = vld [vmem:[#allocation2 + $0x28] sm:$0xff]
        %v425 = vld [vmem:[#allocation2 + $0x30] sm:$0xff]
        %v426 = vld [vmem:[#allocation2 + $0x38] sm:$0xff]
        %427 = vst [vmem:[%s216] sm:$0xff] %v419
        %428 = vst [vmem:[%s216 + $0x8] sm:$0xff] %v420
        %429 = vst [vmem:[%s216 + $0x10] sm:$0xff] %v421
        %430 = vst [vmem:[%s216 + $0x18] sm:$0xff] %v422
        %431 = vst [vmem:[%s216 + $0x20] sm:$0xff] %v423
        %432 = vst [vmem:[%s216 + $0x28] sm:$0xff] %v424
        %433 = vst [vmem:[%s216 + $0x30] sm:$0xff] %v425
        %434 = vst [vmem:[%s216 + $0x38] sm:$0xff] %v426
      $region36: #{sim_2layer_arma_graphconv.4} parent=27 // pred_fallthru
        _
      %s435 = smul.u32 8, %s18
      %p436 = scmp.lt.s32.totalorder %s435, 15
      %s437 = scalar_select %p436, %s435, 15
      %p438 = scmp.lt.s32.totalorder %s19, 0
      %s439 = scalar_select %p438, %s19, 0
      %s440 = sadd.s32 %s439, %s437
      %s441 = smul.addr %s440, 8
      %s442 = scalar_lea.vmem %s2, %s441
      // Predicated region
      $region37: #{sim_2layer_arma_graphconv.4} parent=27 // pred_check
        %p443 = pneg %p108
      $region38: #{sim_2layer_arma_graphconv.4} parent=27 // pred_check_branch
        %445 = sbr.rel (%p443) target = $region40
      $region39: #{sim_2layer_arma_graphconv.4} parent=27 // pred_region
        %s446 = smul.u32 8, %s18
      $region40: #{sim_2layer_arma_graphconv.4} parent=27 // pred_fallthru
        _
    $region28: #{sim_2layer_arma_graphconv.4} parent=5 // pred_fallthru
      _
    %p447 = scmp.le.s32.totalorder 2, %s8
    // Predicated region
    $region41: #{sim_2layer_arma_graphconv.4} parent=5 // pred_check
      %p448 = pneg %p447
    $region42: #{sim_2layer_arma_graphconv.4} parent=5 // pred_check_branch
      %450 = sbr.rel (%p448) target = $region44
    $region43: #{sim_2layer_arma_graphconv.4} parent=5 // pred_region
      %s451 = ssub.s32 %s8, 2
      // Predicated region
      $region45: #{sim_2layer_arma_graphconv.4} parent=43 // pred_check
        %p452 = pneg %p114
      $region46: #{sim_2layer_arma_graphconv.4} parent=43 // pred_check_branch
        %454 = sbr.rel (%p452) target = $region48
      $region47: #{sim_2layer_arma_graphconv.4} parent=43 // pred_region
        %s455 = smul.u32 8, %s21
        %p456 = scmp.lt.s32.totalorder %s455, 15
        %s457 = scalar_select %p456, %s455, 15
        %p458 = scmp.lt.s32.totalorder %s22, 0
        %s459 = scalar_select %p458, %s22, 0
        %s460 = sadd.s32 %s459, %s457
        %s461 = smul.addr %s460, 8
        %s462 = scalar_lea.vmem %s2, %s461
      $region48: #{sim_2layer_arma_graphconv.4} parent=43 // pred_fallthru
        _
    $region44: #{sim_2layer_arma_graphconv.4} parent=5 // pred_fallthru
      _
  $region6: #{sim_2layer_arma_graphconv.4} parent=0 // loop_footer
    %s12 = sadd.s32 1, %s8
  $region7: #{sim_2layer_arma_graphconv.4} parent=0 // loop_footer_branch
    %7 = sbr.rel target = $region3
  $region8: #{sim_2layer_arma_graphconv.4} parent=0 // loop_exit
    _

// kernel: sim_2layer_arma_graphconv.5
$region0: #{sim_2layer_arma_graphconv.5}
  #allocation0 [shape = 'u32[]', space=smem, size = 0x4, offset = 0x4, fixed_abs, tag = 'smem constant byte address 0x4 - core index']
  #allocation1 [shape = 'u32[144,128]{1,0:T(1,128)}', space=vmem, size = 0x12000, scoped, tag = 'internal scratch']
  #allocation2 [shape = 'f32[64,256]{1,0:T(8,128)}', space=vmem, size = 0x10000, scoped, tag = 'scratch operand']
  %s0 = inlined_call_operand.vmem [shape: f32[128,256], index: 0, kind: input, shape index: {}]
  %s1 = inlined_call_operand.vmem [shape: f32[256,256], index: 1, kind: input, shape index: {}]
  %s2 = inlined_call_operand.vmem [shape: f32[1,256], index: 2, kind: input, shape index: {}]
  %s3 = inlined_call_operand.vmem [shape: f32[128,128], index: 3, kind: output, shape index: {}]
  %s4 = sld [smem:[#allocation0]]
  $region53: #{sim_2layer_arma_graphconv.5} parent=0
    _
  %s6 = ssub.s32 1, %s4
  %s7 = scalar_select 0, %s6, %s4
  loop: start=0, step=1, limit=4
  $region2: #{sim_2layer_arma_graphconv.5} parent=0 // loop_pre_header
    _
  $region3: #{sim_2layer_arma_graphconv.5} parent=0 // loop_header
    %s9 = sphi 0, %s13
    %p10 = scmp.ge.s32.totalorder %s9, 4
    %s16 = sphi 0, %s28
    %s17 = sphi 0, %s24
    %s18 = sphi 0, %s16
    %s19 = sphi 0, %s17
    %s20 = sphi 0, %s18
    %s21 = sphi 0, %s19
    %s33 = sphi 0, %s35
    %s36 = sphi 0, %s33
    %s37 = sphi 0, %s36
    %s53 = sphi 0, %s37
    %s59 = sphi 0, %s61
    %s62 = sphi 0, %s59
    %s63 = sphi 0, %s62
    %s79 = sphi 0, %s63
    %s83 = sphi 0, %s83
    %s85 = sphi 0, %s83
    %s86 = sphi 0, %s85
    %s100 = sphi 0, %s86
    %s106 = sphi 0, %s108
    %s109 = sphi 0, %s106
    %s110 = sphi 0, %s109
    %s126 = sphi 0, %s110
  $region4: #{sim_2layer_arma_graphconv.5} parent=0 // loop_header_branch
    %12 = sbr.rel (%p10) target = $region8
  $region5: #{sim_2layer_arma_graphconv.5} parent=0 // loop_body
    %s14 = ssub.s32 %s9, 1
    %s15 = ssub.s32 %s9, 2
    %s22 = sadd.s32 1, %s17
    %p23 = scmp.ge.s32.totalorder %s22, 1
    %s24 = scalar_select %p23, 0, %s22
    %s25 = sadd.s32 1, %s16
    %s26 = scalar_select %p23, %s25, %s16
    %p27 = scmp.ge.s32.totalorder %s26, 2
    %s28 = scalar_select %p27, 0, %s26
    %s29 = ssub.s32 %s16, %s28
    %s30 = ssub.s32 %s17, %s24
    %s31 = sor.u32 %s29, %s30
    %p32 = scmp.eq.s32.totalorder %s31, 0
    %s34 = sadd.s32 %s33, 1
    %s35 = scalar_select %p32, %s33, %s34
    %p38 = pneg %p32
    %p39 = scmp.eq.s32.totalorder %s9, 1
    %p40 = por %p38, %p39
    %p41 = scmp.ne.s32.totalorder %s33, %s36
    %p42 = scmp.eq.s32.totalorder %s9, 0
    %p43 = por %p41, %p42
    %p44 = scmp.ne.s32.totalorder %s33, %s36
    %p45 = scmp.eq.s32.totalorder %s14, 1
    %p46 = por %p44, %p45
    %p47 = scmp.ne.s32.totalorder %s36, %s37
    %p48 = scmp.eq.s32.totalorder %s14, 0
    %p49 = por %p47, %p48
    %p50 = scmp.ne.s32.totalorder %s36, %s37
    %p51 = scmp.eq.s32.totalorder %s15, 1
    %p52 = por %p50, %p51
    %p54 = scmp.ne.s32.totalorder %s37, %s53
    %p55 = scmp.eq.s32.totalorder %s15, 0
    %p56 = por %p54, %p55
    %s57 = ssub.s32 %s17, %s24
    %p58 = scmp.eq.s32.totalorder %s57, 0
    %s60 = sadd.s32 %s59, 1
    %s61 = scalar_select %p58, %s59, %s60
    %p64 = pneg %p58
    %p65 = scmp.eq.s32.totalorder %s9, 1
    %p66 = por %p64, %p65
    %p67 = scmp.ne.s32.totalorder %s59, %s62
    %p68 = scmp.eq.s32.totalorder %s9, 0
    %p69 = por %p67, %p68
    %p70 = scmp.ne.s32.totalorder %s59, %s62
    %p71 = scmp.eq.s32.totalorder %s14, 1
    %p72 = por %p70, %p71
    %p73 = scmp.ne.s32.totalorder %s62, %s63
    %p74 = scmp.eq.s32.totalorder %s14, 0
    %p75 = por %p73, %p74
    %p76 = scmp.ne.s32.totalorder %s62, %s63
    %p77 = scmp.eq.s32.totalorder %s15, 1
    %p78 = por %p76, %p77
    %p80 = scmp.ne.s32.totalorder %s63, %s79
    %p81 = scmp.eq.s32.totalorder %s15, 0
    %p82 = por %p80, %p81
    %s84 = sadd.s32 %s83, 1
    %p87 = scmp.eq.s32.totalorder %s9, 1
    %p88 = scmp.ne.s32.totalorder %s83, %s85
    %p89 = scmp.eq.s32.totalorder %s9, 0
    %p90 = por %p88, %p89
    %p91 = scmp.ne.s32.totalorder %s83, %s85
    %p92 = scmp.eq.s32.totalorder %s14, 1
    %p93 = por %p91, %p92
    %p94 = scmp.ne.s32.totalorder %s85, %s86
    %p95 = scmp.eq.s32.totalorder %s14, 0
    %p96 = por %p94, %p95
    %p97 = scmp.ne.s32.totalorder %s85, %s86
    %p98 = scmp.eq.s32.totalorder %s15, 1
    %p99 = por %p97, %p98
    %p101 = scmp.ne.s32.totalorder %s86, %s100
    %p102 = scmp.eq.s32.totalorder %s15, 0
    %p103 = por %p101, %p102
    %s104 = ssub.s32 %s16, %s28
    %p105 = scmp.eq.s32.totalorder %s104, 0
    %s107 = sadd.s32 %s106, 1
    %s108 = scalar_select %p105, %s106, %s107
    %p111 = pneg %p105
    %p112 = scmp.eq.s32.totalorder %s9, 1
    %p113 = por %p111, %p112
    %p114 = scmp.ne.s32.totalorder %s106, %s109
    %p115 = scmp.eq.s32.totalorder %s9, 0
    %p116 = por %p114, %p115
    %p117 = scmp.ne.s32.totalorder %s106, %s109
    %p118 = scmp.eq.s32.totalorder %s14, 1
    %p119 = por %p117, %p118
    %p120 = scmp.ne.s32.totalorder %s109, %s110
    %p121 = scmp.eq.s32.totalorder %s14, 0
    %p122 = por %p120, %p121
    %p123 = scmp.ne.s32.totalorder %s109, %s110
    %p124 = scmp.eq.s32.totalorder %s15, 1
    %p125 = por %p123, %p124
    %p127 = scmp.ne.s32.totalorder %s110, %s126
    %p128 = scmp.eq.s32.totalorder %s15, 0
    %p129 = por %p127, %p128
    %p130 = scmp.le.s32.totalorder 1, %s9
    %p131 = scmp.lt.s32.totalorder %s9, 3
    %p132 = pnand %p130, %p131
    %p133 = pneg %p132
    // Predicated region
    $region9: #{sim_2layer_arma_graphconv.5} parent=5 // pred_check
      _
    $region10: #{sim_2layer_arma_graphconv.5} parent=5 // pred_check_branch
      %135 = sbr.rel (%p132) target = $region12
    $region11: #{sim_2layer_arma_graphconv.5} parent=5 // pred_region
      %s136 = ssub.s32 %s9, 1
      // Predicated region
      $region13: #{sim_2layer_arma_graphconv.5} parent=11 // pred_check
        %p137 = pneg %p75
      $region14: #{sim_2layer_arma_graphconv.5} parent=11 // pred_check_branch
        %139 = sbr.rel (%p137) target = $region16
      $region15: #{sim_2layer_arma_graphconv.5} parent=11 // pred_region
        %s140 = smul.u32 32, %s19
        %p141 = scmp.lt.s32.totalorder %s140, 31
        %s142 = scalar_select %p141, %s140, 31
        %s143 = smul.addr %s142, 2
        %s144 = smul.addr %s143, 8
        %s145 = scalar_lea.vmem %s1, %s144
        %s146 = smul.u32 32, %s19
      $region16: #{sim_2layer_arma_graphconv.5} parent=11 // pred_fallthru
        _
      // Predicated region
      $region17: #{sim_2layer_arma_graphconv.5} parent=11 // pred_check
        %p147 = pneg %p96
      $region18: #{sim_2layer_arma_graphconv.5} parent=11 // pred_check_branch
        %149 = sbr.rel (%p147) target = $region20
      $region19: #{sim_2layer_arma_graphconv.5} parent=11 // pred_region
        _
      $region20: #{sim_2layer_arma_graphconv.5} parent=11 // pred_fallthru
        _
    $region12: #{sim_2layer_arma_graphconv.5} parent=5 // pred_fallthru
      _
    %p150 = scmp.lt.s32.totalorder %s9, 2
    // Predicated region
    $region21: #{sim_2layer_arma_graphconv.5} parent=5 // pred_check
      %p151 = pneg %p150
    $region22: #{sim_2layer_arma_graphconv.5} parent=5 // pred_check_branch
      %153 = sbr.rel (%p151) target = $region24
    $region23: #{sim_2layer_arma_graphconv.5} parent=5 // pred_region
      // Predicated region
      $region25: #{sim_2layer_arma_graphconv.5} parent=23 // pred_check
        %p154 = pneg %p43
      $region26: #{sim_2layer_arma_graphconv.5} parent=23 // pred_check_branch
        %156 = sbr.rel (%p154) target = $region28
      $region27: #{sim_2layer_arma_graphconv.5} parent=23 // pred_region
        %s157 = smul.u32 8, %s16
        %s158 = smul.u32 2, %s17
        %p159 = scmp.lt.s32.totalorder %s157, 15
        %s160 = scalar_select %p159, %s157, 15
        %p161 = scmp.lt.s32.totalorder %s158, 1
        %s162 = scalar_select %p161, %s158, 1
        %s163 = smul.addr %s160, 2
        %s164 = sadd.s32 %s162, %s163
        %s165 = smul.addr %s164, 8
        %s166 = scalar_lea.vmem %s0, %s165
        %s167 = smul.u32 8, %s16
        %s168 = smul.u32 2, %s17
      $region28: #{sim_2layer_arma_graphconv.5} parent=23 // pred_fallthru
        _
    $region24: #{sim_2layer_arma_graphconv.5} parent=5 // pred_fallthru
      _
    %p169 = scmp.le.s32.totalorder 1, %s9
    %p170 = scmp.lt.s32.totalorder %s9, 3
    %p171 = pnand %p169, %p170
    %p172 = pneg %p171
    // Predicated region
    $region29: #{sim_2layer_arma_graphconv.5} parent=5 // pred_check
      _
    $region30: #{sim_2layer_arma_graphconv.5} parent=5 // pred_check_branch
      %174 = sbr.rel (%p171) target = $region32
    $region31: #{sim_2layer_arma_graphconv.5} parent=5 // pred_region
      %s175 = ssub.s32 %s9, 1
      %s176 = smul.u32 8, %s18
      %s177 = smul.u32 2, %s19
      %p178 = scmp.lt.s32.totalorder %s176, 15
      %s179 = scalar_select %p178, %s176, 15
      %p180 = scmp.lt.s32.totalorder %s177, 1
      %s181 = scalar_select %p180, %s177, 1
      %s182 = smul.addr %s179, 2
      %s183 = sadd.s32 %s181, %s182
      %s184 = smul.addr %s183, 8
      %s185 = scalar_lea.vmem %s0, %s184
      %p186 = pneg %p49
      %p187 = pneg %p46
      %s188 = smul.u32 32, %s19
      %p189 = scmp.lt.s32.totalorder %s188, 31
      %s190 = scalar_select %p189, %s188, 31
      %s191 = smul.addr %s190, 2
      %s192 = smul.addr %s191, 8
      %s193 = scalar_lea.vmem %s1, %s192
      %p194 = pneg %p75
      %p195 = pneg %p72
      %p196 = pneg %p96
      %p197 = pneg %p93
      %p198 = pneg %p122
      %p199 = pneg %p119
      %s200 = smul.u32 8, %s18
      %p201 = scmp.lt.s32.totalorder %s200, 15
      %s202 = scalar_select %p201, %s200, 15
      %s203 = smul.addr %s202, 8
      %s204 = scalar_lea.vmem %s3, %s203
      %s205 = smul.u32 8, %s18
      %s206 = smul.u32 2, %s19
      %p207 = scmp.lt.s32.totalorder %s205, 15
      %s208 = scalar_select %p207, %s205, 15
      %p209 = scmp.lt.s32.totalorder %s206, 1
      %s210 = scalar_select %p209, %s206, 1
      %s211 = smul.addr %s208, 2
      %s212 = sadd.s32 %s210, %s211
      %s213 = smul.addr %s212, 8
      %s214 = scalar_lea.vmem %s0, %s213
      %s215 = smul.u32 8, %s18
      %s216 = smul.u32 2, %s19
      %s217 = smul.u32 32, %s19
      %p218 = scmp.lt.s32.totalorder %s217, 31
      %s219 = scalar_select %p218, %s217, 31
      %s220 = smul.addr %s219, 2
      %s221 = smul.addr %s220, 8
      %s222 = scalar_lea.vmem %s1, %s221
      %s223 = smul.u32 32, %s19
      %s224 = smul.u32 8, %s18
      %p225 = scmp.lt.s32.totalorder %s224, 15
      %s226 = scalar_select %p225, %s224, 15
      %s227 = smul.addr %s226, 8
      %s228 = scalar_lea.vmem %s3, %s227
      %s229 = smul.u32 8, %s18
      %p230 = scmp.eq.s32.totalorder %s19, 0
      // Predicated region
      $region33: #{sim_2layer_arma_graphconv.5} parent=31 // pred_check
        %p231 = pneg %p230
      $region34: #{sim_2layer_arma_graphconv.5} parent=31 // pred_check_branch
        %233 = sbr.rel (%p231) target = $region36
      $region35: #{sim_2layer_arma_graphconv.5} parent=31 // pred_region
        %234 = vst [vmem:[#allocation2] sm:$0xff] 0.0
        %235 = vst [vmem:[#allocation2 + $0x8] sm:$0xff] 0.0
        %236 = vst [vmem:[#allocation2 + $0x10] sm:$0xff] 0.0
        %237 = vst [vmem:[#allocation2 + $0x18] sm:$0xff] 0.0
        %238 = vst [vmem:[#allocation2 + $0x20] sm:$0xff] 0.0
        %239 = vst [vmem:[#allocation2 + $0x28] sm:$0xff] 0.0
        %240 = vst [vmem:[#allocation2 + $0x30] sm:$0xff] 0.0
        %241 = vst [vmem:[#allocation2 + $0x38] sm:$0xff] 0.0
        %242 = vst [vmem:[#allocation2 + $0x40] sm:$0xff] 0.0
        %243 = vst [vmem:[#allocation2 + $0x48] sm:$0xff] 0.0
        %244 = vst [vmem:[#allocation2 + $0x50] sm:$0xff] 0.0
        %245 = vst [vmem:[#allocation2 + $0x58] sm:$0xff] 0.0
        %246 = vst [vmem:[#allocation2 + $0x60] sm:$0xff] 0.0
        %247 = vst [vmem:[#allocation2 + $0x68] sm:$0xff] 0.0
        %248 = vst [vmem:[#allocation2 + $0x70] sm:$0xff] 0.0
        %249 = vst [vmem:[#allocation2 + $0x78] sm:$0xff] 0.0
      $region36: #{sim_2layer_arma_graphconv.5} parent=31 // pred_fallthru
        _
      %v250 = vld [vmem:[#allocation2] sm:$0xff]
      %v251 = vld [vmem:[#allocation2 + $0x8] sm:$0xff]
      %v252 = vld [vmem:[#allocation2 + $0x10] sm:$0xff]
      %v253 = vld [vmem:[#allocation2 + $0x18] sm:$0xff]
      %v254 = vld [vmem:[#allocation2 + $0x20] sm:$0xff]
      %v255 = vld [vmem:[#allocation2 + $0x28] sm:$0xff]
      %v256 = vld [vmem:[#allocation2 + $0x30] sm:$0xff]
      %v257 = vld [vmem:[#allocation2 + $0x38] sm:$0xff]
      %v258 = vld [vmem:[#allocation2 + $0x40] sm:$0xff]
      %v259 = vld [vmem:[#allocation2 + $0x48] sm:$0xff]
      %v260 = vld [vmem:[#allocation2 + $0x50] sm:$0xff]
      %v261 = vld [vmem:[#allocation2 + $0x58] sm:$0xff]
      %v262 = vld [vmem:[#allocation2 + $0x60] sm:$0xff]
      %v263 = vld [vmem:[#allocation2 + $0x68] sm:$0xff]
      %v264 = vld [vmem:[#allocation2 + $0x70] sm:$0xff]
      %v265 = vld [vmem:[#allocation2 + $0x78] sm:$0xff]
      %v266 = vld [vmem:[%s214] sm:$0xff]
      %v267 = vld [vmem:[%s214 + $0x8] sm:$0xff]
      %v268 = vld [vmem:[%s214 + $0x10] sm:$0xff]
      %v269 = vld [vmem:[%s214 + $0x18] sm:$0xff]
      %v270 = vld [vmem:[%s214 + $0x20] sm:$0xff]
      %v271 = vld [vmem:[%s214 + $0x28] sm:$0xff]
      %v272 = vld [vmem:[%s214 + $0x30] sm:$0xff]
      %v273 = vld [vmem:[%s214 + $0x38] sm:$0xff]
      %v274 = vld [vmem:[%s214 + $0x40] sm:$0xff]
      %v275 = vld [vmem:[%s214 + $0x48] sm:$0xff]
      %v276 = vld [vmem:[%s214 + $0x50] sm:$0xff]
      %v277 = vld [vmem:[%s214 + $0x58] sm:$0xff]
      %v278 = vld [vmem:[%s214 + $0x60] sm:$0xff]
      %v279 = vld [vmem:[%s214 + $0x68] sm:$0xff]
      %v280 = vld [vmem:[%s214 + $0x70] sm:$0xff]
      %v281 = vld [vmem:[%s214 + $0x78] sm:$0xff]
      %v282 = vld [vmem:[%s222] sm:$0xff]
      %v283 = vld [vmem:[%s222 + $0x8] sm:$0xff]
      %v284 = vld [vmem:[%s222 + $0x10] sm:$0xff]
      %v285 = vld [vmem:[%s222 + $0x18] sm:$0xff]
      %v286 = vld [vmem:[%s222 + $0x20] sm:$0xff]
      %v287 = vld [vmem:[%s222 + $0x28] sm:$0xff]
      %v288 = vld [vmem:[%s222 + $0x30] sm:$0xff]
      %v289 = vld [vmem:[%s222 + $0x38] sm:$0xff]
      %v290 = vld [vmem:[%s222 + $0x40] sm:$0xff]
      %v291 = vld [vmem:[%s222 + $0x48] sm:$0xff]
      %v292 = vld [vmem:[%s222 + $0x50] sm:$0xff]
      %v293 = vld [vmem:[%s222 + $0x58] sm:$0xff]
      %v294 = vld [vmem:[%s222 + $0x60] sm:$0xff]
      %v295 = vld [vmem:[%s222 + $0x68] sm:$0xff]
      %v296 = vld [vmem:[%s222 + $0x70] sm:$0xff]
      %v297 = vld [vmem:[%s222 + $0x78] sm:$0xff]
      %v298 = vld [vmem:[%s222 + $0x80] sm:$0xff]
      %v299 = vld [vmem:[%s222 + $0x88] sm:$0xff]
      %v300 = vld [vmem:[%s222 + $0x90] sm:$0xff]
      %v301 = vld [vmem:[%s222 + $0x98] sm:$0xff]
      %v302 = vld [vmem:[%s222 + $0xa0] sm:$0xff]
      %v303 = vld [vmem:[%s222 + $0xa8] sm:$0xff]
      %v304 = vld [vmem:[%s222 + $0xb0] sm:$0xff]
      %v305 = vld [vmem:[%s222 + $0xb8] sm:$0xff]
      %v306 = vld [vmem:[%s222 + $0xc0] sm:$0xff]
      %v307 = vld [vmem:[%s222 + $0xc8] sm:$0xff]
      %v308 = vld [vmem:[%s222 + $0xd0] sm:$0xff]
      %v309 = vld [vmem:[%s222 + $0xd8] sm:$0xff]
      %v310 = vld [vmem:[%s222 + $0xe0] sm:$0xff]
      %v311 = vld [vmem:[%s222 + $0xe8] sm:$0xff]
      %v312 = vld [vmem:[%s222 + $0xf0] sm:$0xff]
      %v313 = vld [vmem:[%s222 + $0xf8] sm:$0xff]
      %v314 = vld [vmem:[%s222 + $0x100] sm:$0xff]
      %v315 = vld [vmem:[%s222 + $0x108] sm:$0xff]
      %v316 = vld [vmem:[%s222 + $0x110] sm:$0xff]
      %v317 = vld [vmem:[%s222 + $0x118] sm:$0xff]
      %v318 = vld [vmem:[%s222 + $0x120] sm:$0xff]
      %v319 = vld [vmem:[%s222 + $0x128] sm:$0xff]
      %v320 = vld [vmem:[%s222 + $0x130] sm:$0xff]
      %v321 = vld [vmem:[%s222 + $0x138] sm:$0xff]
      %v322 = vld [vmem:[%s222 + $0x140] sm:$0xff]
      %v323 = vld [vmem:[%s222 + $0x148] sm:$0xff]
      %v324 = vld [vmem:[%s222 + $0x150] sm:$0xff]
      %v325 = vld [vmem:[%s222 + $0x158] sm:$0xff]
      %v326 = vld [vmem:[%s222 + $0x160] sm:$0xff]
      %v327 = vld [vmem:[%s222 + $0x168] sm:$0xff]
      %v328 = vld [vmem:[%s222 + $0x170] sm:$0xff]
      %v329 = vld [vmem:[%s222 + $0x178] sm:$0xff]
      %v330 = vld [vmem:[%s222 + $0x180] sm:$0xff]
      %v331 = vld [vmem:[%s222 + $0x188] sm:$0xff]
      %v332 = vld [vmem:[%s222 + $0x190] sm:$0xff]
      %v333 = vld [vmem:[%s222 + $0x198] sm:$0xff]
      %v334 = vld [vmem:[%s222 + $0x1a0] sm:$0xff]
      %v335 = vld [vmem:[%s222 + $0x1a8] sm:$0xff]
      %v336 = vld [vmem:[%s222 + $0x1b0] sm:$0xff]
      %v337 = vld [vmem:[%s222 + $0x1b8] sm:$0xff]
      %v338 = vld [vmem:[%s222 + $0x1c0] sm:$0xff]
      %v339 = vld [vmem:[%s222 + $0x1c8] sm:$0xff]
      %v340 = vld [vmem:[%s222 + $0x1d0] sm:$0xff]
      %v341 = vld [vmem:[%s222 + $0x1d8] sm:$0xff]
      %v342 = vld [vmem:[%s222 + $0x1e0] sm:$0xff]
      %v343 = vld [vmem:[%s222 + $0x1e8] sm:$0xff]
      %v344 = vld [vmem:[%s222 + $0x1f0] sm:$0xff]
      %v345 = vld [vmem:[%s222 + $0x1f8] sm:$0xff]
      %346 = vmatprep.subr.mxu0 %v313
      %347 = vmatpush1.msra.mxu0 %v312
      %348 = vmatprep.subr.mxu0 %v311
      %349 = vmatpush1.msra.mxu0 %v310
      %350 = vmatprep.subr.mxu0 %v309
      %351 = vmatpush1.msra.mxu0 %v308
      %352 = vmatprep.subr.mxu0 %v307
      %353 = vmatpush1.msra.mxu0 %v306
      %354 = vmatprep.subr.mxu0 %v305
      %355 = vmatpush1.msra.mxu0 %v304
      %356 = vmatprep.subr.mxu0 %v303
      %357 = vmatpush1.msra.mxu0 %v302
      %358 = vmatprep.subr.mxu0 %v301
      %359 = vmatpush1.msra.mxu0 %v300
      %360 = vmatprep.subr.mxu0 %v299
      %361 = vmatpush1.msra.mxu0 %v298
      %362 = vmatprep.subr.mxu0 %v297
      %363 = vmatpush1.msra.mxu0 %v296
      %364 = vmatprep.subr.mxu0 %v295
      %365 = vmatpush1.msra.mxu0 %v294
      %366 = vmatprep.subr.mxu0 %v293
      %367 = vmatpush1.msra.mxu0 %v292
      %368 = vmatprep.subr.mxu0 %v291
      %369 = vmatpush1.msra.mxu0 %v290
      %370 = vmatprep.subr.mxu0 %v289
      %371 = vmatpush1.msra.mxu0 %v288
      %372 = vmatprep.subr.mxu0 %v287
      %373 = vmatpush1.msra.mxu0 %v286
      %374 = vmatprep.subr.mxu0 %v285
      %375 = vmatpush1.msra.mxu0 %v284
      %376 = vmatprep.subr.mxu0 %v283
      %377 = vmatpush1.msra.mxu0 %v282
      %378 = vmatprep.subr.mxu0 %v345
      %379 = vmatpush2.msra.mxu0 %v344
      %380 = vmatprep.subr.mxu0 %v343
      %381 = vmatpush2.msra.mxu0 %v342
      %382 = vmatprep.subr.mxu0 %v341
      %383 = vmatpush2.msra.mxu0 %v340
      %384 = vmatprep.subr.mxu0 %v339
      %385 = vmatpush2.msra.mxu0 %v338
      %386 = vmatprep.subr.mxu0 %v337
      %387 = vmatpush2.msra.mxu0 %v336
      %388 = vmatprep.subr.mxu0 %v335
      %389 = vmatpush2.msra.mxu0 %v334
      %390 = vmatprep.subr.mxu0 %v333
      %391 = vmatpush2.msra.mxu0 %v332
      %392 = vmatprep.subr.mxu0 %v331
      %393 = vmatpush2.msra.mxu0 %v330
      %394 = vmatprep.subr.mxu0 %v329
      %395 = vmatpush2.msra.mxu0 %v328
      %396 = vmatprep.subr.mxu0 %v327
      %397 = vmatpush2.msra.mxu0 %v326
      %398 = vmatprep.subr.mxu0 %v325
      %399 = vmatpush2.msra.mxu0 %v324
      %400 = vmatprep.subr.mxu0 %v323
      %401 = vmatpush2.msra.mxu0 %v322
      %402 = vmatprep.subr.mxu0 %v321
      %403 = vmatpush2.msra.mxu0 %v320
      %404 = vmatprep.subr.mxu0 %v319
      %405 = vmatpush2.msra.mxu0 %v318
      %406 = vmatprep.subr.mxu0 %v317
      %407 = vmatpush2.msra.mxu0 %v316
      %408 = vmatprep.subr.mxu0 %v315
      %409 = vmatpush2.msra.mxu0 %v314
      %410 = vmatprep.mubr.f32.mxu0 %v267
      %411 = vmatmul.mubr.f32.gmra.mxu0 %v266
      %v412 = vpop.f32.mrf.mxu0
      %v413 = vadd.f32 0.0, %v412
      %v414 = vpop.f32.mrf.mxu0
      %v415 = vadd.f32 0.0, %v414
      %416 = vmatprep.mubr.f32.mxu0 %v269
      %417 = vmatmul.mubr.f32.gmra.mxu0 %v268
      %v418 = vpop.f32.mrf.mxu0
      %v419 = vadd.f32 0.0, %v418
      %v420 = vpop.f32.mrf.mxu0
      %v421 = vadd.f32 0.0, %v420
      %422 = vmatprep.mubr.f32.mxu0 %v271
      %423 = vmatmul.mubr.f32.gmra.mxu0 %v270
      %v424 = vpop.f32.mrf.mxu0
      %v425 = vadd.f32 0.0, %v424
      %v426 = vpop.f32.mrf.mxu0
      %v427 = vadd.f32 0.0, %v426
      %428 = vmatprep.mubr.f32.mxu0 %v273
      %429 = vmatmul.mubr.f32.gmra.mxu0 %v272
      %v430 = vpop.f32.mrf.mxu0
      %v431 = vadd.f32 0.0, %v430
      %v432 = vpop.f32.mrf.mxu0
      %v433 = vadd.f32 0.0, %v432
      %434 = vmatprep.mubr.f32.mxu0 %v275
      %435 = vmatmul.mubr.f32.gmra.mxu0 %v274
      %v436 = vpop.f32.mrf.mxu0
      %v437 = vadd.f32 0.0, %v436
      %v438 = vpop.f32.mrf.mxu0
      %v439 = vadd.f32 0.0, %v438
      %440 = vmatprep.mubr.f32.mxu0 %v277
      %441 = vmatmul.mubr.f32.gmra.mxu0 %v276
      %v442 = vpop.f32.mrf.mxu0
      %v443 = vadd.f32 0.0, %v442
      %v444 = vpop.f32.mrf.mxu0
      %v445 = vadd.f32 0.0, %v444
      %446 = vmatprep.mubr.f32.mxu0 %v279
      %447 = vmatmul.mubr.f32.gmra.mxu0 %v278
      %v448 = vpop.f32.mrf.mxu0
      %v449 = vadd.f32 0.0, %v448
      %v450 = vpop.f32.mrf.mxu0
      %v451 = vadd.f32 0.0, %v450
      %452 = vmatprep.mubr.f32.mxu0 %v281
      %453 = vmatmul.mubr.f32.gmra.mxu0 %v280
      %v454 = vpop.f32.mrf.mxu0
      %v455 = vadd.f32 0.0, %v454
      %v456 = vpop.f32.mrf.mxu0
      %v457 = vadd.f32 0.0, %v456
      %458 = vdwg.mxu0
      %v459 = vadd.f32 %v250, %v413
      %v460 = vadd.f32 %v251, %v415
      %v461 = vadd.f32 %v252, %v419
      %v462 = vadd.f32 %v253, %v421
      %v463 = vadd.f32 %v254, %v425
      %v464 = vadd.f32 %v255, %v427
      %v465 = vadd.f32 %v256, %v431
      %v466 = vadd.f32 %v257, %v433
      %v467 = vadd.f32 %v258, %v437
      %v468 = vadd.f32 %v259, %v439
      %v469 = vadd.f32 %v260, %v443
      %v470 = vadd.f32 %v261, %v445
      %v471 = vadd.f32 %v262, %v449
      %v472 = vadd.f32 %v263, %v451
      %v473 = vadd.f32 %v264, %v455
      %v474 = vadd.f32 %v265, %v457
      %475 = vst [vmem:[#allocation2] sm:$0xff] %v459
      %476 = vst [vmem:[#allocation2 + $0x8] sm:$0xff] %v460
      %477 = vst [vmem:[#allocation2 + $0x10] sm:$0xff] %v461
      %478 = vst [vmem:[#allocation2 + $0x18] sm:$0xff] %v462
      %479 = vst [vmem:[#allocation2 + $0x20] sm:$0xff] %v463
      %480 = vst [vmem:[#allocation2 + $0x28] sm:$0xff] %v464
      %481 = vst [vmem:[#allocation2 + $0x30] sm:$0xff] %v465
      %482 = vst [vmem:[#allocation2 + $0x38] sm:$0xff] %v466
      %483 = vst [vmem:[#allocation2 + $0x40] sm:$0xff] %v467
      %484 = vst [vmem:[#allocation2 + $0x48] sm:$0xff] %v468
      %485 = vst [vmem:[#allocation2 + $0x50] sm:$0xff] %v469
      %486 = vst [vmem:[#allocation2 + $0x58] sm:$0xff] %v470
      %487 = vst [vmem:[#allocation2 + $0x60] sm:$0xff] %v471
      %488 = vst [vmem:[#allocation2 + $0x68] sm:$0xff] %v472
      %489 = vst [vmem:[#allocation2 + $0x70] sm:$0xff] %v473
      %490 = vst [vmem:[#allocation2 + $0x78] sm:$0xff] %v474
      // Predicated region
      $region37: #{sim_2layer_arma_graphconv.5} parent=31 // pred_check
        %p491 = pneg %p230
      $region38: #{sim_2layer_arma_graphconv.5} parent=31 // pred_check_branch
        %493 = sbr.rel (%p491) target = $region40
      $region39: #{sim_2layer_arma_graphconv.5} parent=31 // pred_region
        %v494 = vld [vmem:[#allocation2] sm:$0xff]
        %v495 = vld [vmem:[#allocation2 + $0x8] sm:$0xff]
        %v496 = vld [vmem:[#allocation2 + $0x10] sm:$0xff]
        %v497 = vld [vmem:[#allocation2 + $0x18] sm:$0xff]
        %v498 = vld [vmem:[#allocation2 + $0x20] sm:$0xff]
        %v499 = vld [vmem:[#allocation2 + $0x28] sm:$0xff]
        %v500 = vld [vmem:[#allocation2 + $0x30] sm:$0xff]
        %v501 = vld [vmem:[#allocation2 + $0x38] sm:$0xff]
        %v502 = vld [vmem:[#allocation2 + $0x40] sm:$0xff]
        %v503 = vld [vmem:[#allocation2 + $0x48] sm:$0xff]
        %v504 = vld [vmem:[#allocation2 + $0x50] sm:$0xff]
        %v505 = vld [vmem:[#allocation2 + $0x58] sm:$0xff]
        %v506 = vld [vmem:[#allocation2 + $0x60] sm:$0xff]
        %v507 = vld [vmem:[#allocation2 + $0x68] sm:$0xff]
        %v508 = vld [vmem:[#allocation2 + $0x70] sm:$0xff]
        %v509 = vld [vmem:[#allocation2 + $0x78] sm:$0xff]
        %v510 = vld [vmem:[%s2] sm:$0x3]
        %v512 = vlaneseq
        %v513 = vshrl.u32 %v512, 7
        %v514 = vsub.s32 0, %v513
        %v515 = vrot.slane %v510, %v514
        %v516 = vlaneseq
        %v517 = vshrl.u32 %v516, 7
        %v518 = vsub.s32 1, %v517
        %v519 = vrot.slane %v510, %v518
        %v522 = vadd.f32 %v494, %v515
        %v523 = vadd.f32 %v495, %v519
        %v524 = vadd.f32 %v496, %v515
        %v525 = vadd.f32 %v497, %v519
        %v526 = vadd.f32 %v498, %v515
        %v527 = vadd.f32 %v499, %v519
        %v528 = vadd.f32 %v500, %v515
        %v529 = vadd.f32 %v501, %v519
        %v530 = vadd.f32 %v502, %v515
        %v531 = vadd.f32 %v503, %v519
        %v532 = vadd.f32 %v504, %v515
        %v533 = vadd.f32 %v505, %v519
        %v534 = vadd.f32 %v506, %v515
        %v535 = vadd.f32 %v507, %v519
        %v536 = vadd.f32 %v508, %v515
        %v537 = vadd.f32 %v509, %v519
        %v538 = vmax.f32 %v522, 0.0
        %v539 = vmax.f32 %v524, 0.0
        %v540 = vmax.f32 %v526, 0.0
        %v541 = vmax.f32 %v528, 0.0
        %v542 = vmax.f32 %v530, 0.0
        %v543 = vmax.f32 %v532, 0.0
        %v544 = vmax.f32 %v534, 0.0
        %v545 = vmax.f32 %v536, 0.0
        %v546 = vmax.f32 %v523, 0.0
        %v547 = vmax.f32 %v525, 0.0
        %v548 = vmax.f32 %v527, 0.0
        %v549 = vmax.f32 %v529, 0.0
        %v550 = vmax.f32 %v531, 0.0
        %v551 = vmax.f32 %v533, 0.0
        %v552 = vmax.f32 %v535, 0.0
        %v553 = vmax.f32 %v537, 0.0
        %v554 = vadd.f32 %v538, %v546
        %v555 = vadd.f32 %v539, %v547
        %v556 = vadd.f32 %v540, %v548
        %v557 = vadd.f32 %v541, %v549
        %v558 = vadd.f32 %v542, %v550
        %v559 = vadd.f32 %v543, %v551
        %v560 = vadd.f32 %v544, %v552
        %v561 = vadd.f32 %v545, %v553
        %562 = vst [vmem:[%s228] sm:$0xff] %v554
        %563 = vst [vmem:[%s228 + $0x8] sm:$0xff] %v555
        %564 = vst [vmem:[%s228 + $0x10] sm:$0xff] %v556
        %565 = vst [vmem:[%s228 + $0x18] sm:$0xff] %v557
        %566 = vst [vmem:[%s228 + $0x20] sm:$0xff] %v558
        %567 = vst [vmem:[%s228 + $0x28] sm:$0xff] %v559
        %568 = vst [vmem:[%s228 + $0x30] sm:$0xff] %v560
        %569 = vst [vmem:[%s228 + $0x38] sm:$0xff] %v561
      $region40: #{sim_2layer_arma_graphconv.5} parent=31 // pred_fallthru
        _
      %s570 = smul.u32 8, %s18
      %p571 = scmp.lt.s32.totalorder %s570, 15
      %s572 = scalar_select %p571, %s570, 15
      %s573 = smul.addr %s572, 8
      %s574 = scalar_lea.vmem %s3, %s573
      // Predicated region
      $region41: #{sim_2layer_arma_graphconv.5} parent=31 // pred_check
        %p575 = pneg %p119
      $region42: #{sim_2layer_arma_graphconv.5} parent=31 // pred_check_branch
        %577 = sbr.rel (%p575) target = $region44
      $region43: #{sim_2layer_arma_graphconv.5} parent=31 // pred_region
        %s578 = smul.u32 8, %s18
      $region44: #{sim_2layer_arma_graphconv.5} parent=31 // pred_fallthru
        _
    $region32: #{sim_2layer_arma_graphconv.5} parent=5 // pred_fallthru
      _
    %p579 = scmp.le.s32.totalorder 2, %s9
    // Predicated region
    $region45: #{sim_2layer_arma_graphconv.5} parent=5 // pred_check
      %p580 = pneg %p579
    $region46: #{sim_2layer_arma_graphconv.5} parent=5 // pred_check_branch
      %582 = sbr.rel (%p580) target = $region48
    $region47: #{sim_2layer_arma_graphconv.5} parent=5 // pred_region
      %s583 = ssub.s32 %s9, 2
      // Predicated region
      $region49: #{sim_2layer_arma_graphconv.5} parent=47 // pred_check
        %p584 = pneg %p125
      $region50: #{sim_2layer_arma_graphconv.5} parent=47 // pred_check_branch
        %586 = sbr.rel (%p584) target = $region52
      $region51: #{sim_2layer_arma_graphconv.5} parent=47 // pred_region
        %s587 = smul.u32 8, %s20
        %p588 = scmp.lt.s32.totalorder %s587, 15
        %s589 = scalar_select %p588, %s587, 15
        %s590 = smul.addr %s589, 8
        %s591 = scalar_lea.vmem %s3, %s590
      $region52: #{sim_2layer_arma_graphconv.5} parent=47 // pred_fallthru
        _
    $region48: #{sim_2layer_arma_graphconv.5} parent=5 // pred_fallthru
      _
  $region6: #{sim_2layer_arma_graphconv.5} parent=0 // loop_footer
    %s13 = sadd.s32 1, %s9
  $region7: #{sim_2layer_arma_graphconv.5} parent=0 // loop_footer_branch
    %8 = sbr.rel target = $region3
  $region8: #{sim_2layer_arma_graphconv.5} parent=0 // loop_exit
    _

</llo_original>
